<compile_context>
chip_gen: v6e
topology: v6e:2x2x1
jax: 0.10.0
libtpu: 0.0.40
codegen_flags: <defaults>
</compile_context>

<pallas_src>
import functools

import jax
import jax.numpy as jnp
from jax import lax
from jax.experimental import pallas as pl
from jax.experimental.pallas import tpu as pltpu


def iflow_kernel(x_ref, u_ref, planar_ref, mlp_ref, out_ref, *, H1, H2):
    B, D = x_ref.shape
    L = planar_ref.shape[0]
    U = u_ref.shape[1]

    # ---------------- Planar normalizing flow (static unroll, L is small) --------
    z = x_ref[...]                               # (B, D) f32
    planar = planar_ref[...]                     # (L, 2D+1): [pw | ps | pb]
    PW = planar[:, 0:D]
    PS = planar[:, D:2 * D]
    PB = planar[:, 2 * D:2 * D + 1]

    ljs = []
    for l in range(L):
        w = PW[l:l + 1, :]                       # (1, D)
        s = PS[l:l + 1, :]                       # (1, D)
        b = PB[l:l + 1, :]                       # (1, 1)
        act = jnp.sum(z * w, axis=-1, keepdims=True) + b      # (B, 1) == F.linear(z, w, b)
        th = jnp.tanh(act)                                     # (B, 1)
        psi = (1.0 - th * th) * w                              # (B, D)
        det = 1.0 + jnp.sum(psi * s, axis=-1, keepdims=True)   # (B, 1) == 1 + psi @ scale.T
        ljs.append(jnp.log(jnp.abs(det) + 1e-9))               # log-det on this step's input
        z = z + s * th                                         # planar transform
    lj = jnp.concatenate(ljs, axis=1)            # (B, L): one value, one store later

    # ---------------- lambda MLP: tiny K/N -> unrolled VPU FMAs, no MXU ----------
    mlp = mlp_ref[...]                           # (U+1+H1+1+H2+1, max(H1,H2,2D))
    r = 0
    w1 = mlp[r:r + U, 0:H1]; r += U              # (U, H1)
    b1 = mlp[r:r + 1, 0:H1]; r += 1              # (1, H1)
    w2 = mlp[r:r + H1, 0:H2]; r += H1            # (H1, H2)
    b2 = mlp[r:r + 1, 0:H2]; r += 1              # (1, H2)
    w3 = mlp[r:r + H2, 0:2 * D]; r += H2         # (H2, 2D)
    b3 = mlp[r:r + 1, 0:2 * D]                   # (1, 2D)

    def vpu_matmul(a, w, bias):
        # (B, K) @ (K, N) + (1, N) as unrolled broadcast multiply-add (K in {3, 6, 5}).
        acc = a[:, 0:1] * w[0:1, :] + bias
        for k in range(1, w.shape[0]):
            acc = acc + a[:, k:k + 1] * w[k:k + 1, :]
        return acc

    u = u_ref[...]                               # (B, U)
    h1 = jnp.maximum(vpu_matmul(u, w1, b1), 0.0)
    h2 = jnp.maximum(vpu_matmul(h1, w2, b2), 0.0)
    eta = vpu_matmul(h2, w3, b3)                 # (B, 2D), flat column c -> [d=c//2, j=c%2]
    nat = jax.nn.sigmoid(eta)                    # nat_param_method == 'original'
    # mask2: column 2*d+0 -> -1, column 2*d+1 -> +1 (apply in interleaved layout)
    col = lax.broadcasted_iota(jnp.int32, (1, 2 * D), 1)
    nat = jnp.where(col % 2 == 0, -nat, nat)

    # ---------------- single lane-contiguous output slab, ONE store --------------
    out_ref[...] = jnp.concatenate([z, z * z, nat, lj], axis=1)   # (B, 4D + L)


@functools.partial(jax.jit, static_argnames=("H1", "H2"))
def iflow_forward(x, u, planar, mlp, *, H1=6, H2=5):
    B, D = x.shape
    L = planar.shape[0]
    vmem = pl.BlockSpec(memory_space=pltpu.MemorySpace.VMEM)
    out = pl.pallas_call(
        functools.partial(iflow_kernel, H1=H1, H2=H2),
        out_shape=jax.ShapeDtypeStruct((B, 4 * D + L), jnp.float32),
        in_specs=[vmem, vmem, vmem, vmem],
        out_specs=vmem,
    )(x, u, planar, mlp)

    # Layout glue (inside jit; views / reshapes / one tiny transpose):
    z = out[:, 0:D]
    zsq = out[:, D:2 * D]
    nat_params = out[:, 2 * D:4 * D].reshape(B, D, 2)             # mask2 already applied
    lj_cols = out[:, 4 * D:4 * D + L]                              # (B, L)
    T = jnp.concatenate([zsq, z], axis=1).reshape(B, 2, D)         # cat((z*z, z),1).view(B,2,D)
    log_jacobians = jnp.transpose(lj_cols)[:, :, None]             # (L, B, 1) stacked per step
    return z, T, nat_params, log_jacobians


def make_params(key, z_dim, u_dim, flow_length):
    """Deterministic synthetic parameters (shapes match the PyTorch module, u_dim==3)."""
    ks = jax.random.split(key, 10)
    D, U, L = z_dim, u_dim, flow_length
    pw = 0.3 * jax.random.normal(ks[0], (L, D), jnp.float32)       # planar weight per step
    pb = 0.3 * jax.random.normal(ks[1], (L, 1), jnp.float32)       # planar bias per step
    ps = 0.3 * jax.random.normal(ks[2], (L, D), jnp.float32)       # planar scale per step
    # _lambda: Linear(3,6) -> ReLU -> Linear(6,5) -> ReLU -> Linear(5, 2*D)
    w1 = 0.5 * jax.random.normal(ks[3], (U, 6), jnp.float32)
    b1 = 0.1 * jax.random.normal(ks[4], (1, 6), jnp.float32)
    w2 = 0.5 * jax.random.normal(ks[5], (6, 5), jnp.float32)
    b2 = 0.1 * jax.random.normal(ks[6], (1, 5), jnp.float32)
    w3 = 0.5 * jax.random.normal(ks[7], (5, 2 * D), jnp.float32)
    b3 = 0.1 * jax.random.normal(ks[8], (1, 2 * D), jnp.float32)
    return {"pw": pw, "pb": pb, "ps": ps,
            "w1": w1, "b1": b1, "w2": w2, "b2": b2, "w3": w3, "b3": b3}


def pack_params(params):
    """Pack the 13 tiny parameter tensors into 2 slabs (1 planar, 1 MLP)."""
    D = params["pw"].shape[1]
    planar = jnp.concatenate([params["pw"], params["ps"], params["pb"]], axis=1)  # (L, 2D+1)
    H1 = params["w1"].shape[1]
    H2 = params["w2"].shape[1]
    C = max(H1, H2, 2 * D)

    def pad(a):
        return jnp.pad(a, ((0, 0), (0, C - a.shape[1])))

    mlp = jnp.concatenate([
        pad(params["w1"]), pad(params["b1"]),
        pad(params["w2"]), pad(params["b2"]),
        pad(params["w3"]), pad(params["b3"]),
    ], axis=0)                                                      # (U+1+H1+1+H2+1, C)
    return planar, mlp, H1, H2


def iflow_reference(x, u, params):
    """Pure-JAX reference mirroring the PyTorch forward."""
    B, D = x.shape
    L = params["pw"].shape[0]
    z = x
    ljs = []
    for l in range(L):
        w = params["pw"][l:l + 1, :]
        s = params["ps"][l:l + 1, :]
        b = params["pb"][l:l + 1, :]
        act = z @ w.T + b
        th = jnp.tanh(act)
        psi = (1.0 - th * th) * w
        det = 1.0 + psi @ s.T
        ljs.append(jnp.log(jnp.abs(det) + 1e-9))
        z = z + s * th
    log_jacobians = jnp.stack(ljs, axis=0)
    T = jnp.concatenate([z * z, z], axis=1).reshape(B, 2, D)
    nat = jnp.maximum(u @ params["w1"] + params["b1"], 0.0)
    nat = jnp.maximum(nat @ params["w2"] + params["b2"], 0.0)
    nat = nat @ params["w3"] + params["b3"]
    nat = jax.nn.sigmoid(nat.reshape(B, D, 2))
    mask2 = jnp.ones((B, D, 2), jnp.float32).at[:, :, 0].set(-1.0)
    nat_params = nat * mask2
    return z, T, nat_params, log_jacobians


if __name__ == "__main__":
    B, D, U, L = 8, 4, 3, 4      # batch, latent/data dim, aux dim, flow_length
    key = jax.random.PRNGKey(0)
    kx, ku, kp = jax.random.split(key, 3)
    x = jax.random.normal(kx, (B, D), jnp.float32)
    u = jax.random.normal(ku, (B, U), jnp.float32)
    params = make_params(kp, D, U, L)
    planar, mlp, H1, H2 = pack_params(params)

    z, T, nat_params, log_jacobians = jax.block_until_ready(
        iflow_forward(x, u, planar, mlp, H1=H1, H2=H2))

    zr, Tr, natr, ljr = iflow_reference(x, u, params)
    assert jnp.allclose(z, zr, atol=1e-3, rtol=1e-3)
    assert jnp.allclose(T, Tr, atol=1e-3, rtol=1e-3)
    assert jnp.allclose(nat_params, natr, atol=1e-3, rtol=1e-3)
    assert jnp.allclose(log_jacobians, ljr, atol=1e-3, rtol=1e-3)

    print("KERNEL_OK")
</pallas_src>

<mosaic_0001>
module attributes {stable_mosaic.version = 11 : i64} {
  func.func @iflow_kernel(%arg0: memref<8x4xf32, #tpu.memory_space<vmem>>, %arg1: memref<8x3xf32, #tpu.memory_space<vmem>>, %arg2: memref<4x9xf32, #tpu.memory_space<vmem>>, %arg3: memref<17x8xf32, #tpu.memory_space<vmem>>, %arg4: memref<8x20xf32, #tpu.memory_space<vmem>>) attributes {dimension_semantics = [], scalar_prefetch = 0 : i64, scratch_operands = 0 : i64, tpu.core_type = #tpu.core_type<tc>} {
    %c0 = arith.constant 0 : index
    %c0_0 = arith.constant 0 : index
    %0 = vector.load %arg0[%c0, %c0_0] : memref<8x4xf32, #tpu.memory_space<vmem>>, vector<8x4xf32>
    %c0_1 = arith.constant 0 : index
    %c0_2 = arith.constant 0 : index
    %1 = vector.load %arg2[%c0_1, %c0_2] : memref<4x9xf32, #tpu.memory_space<vmem>>, vector<4x9xf32>
    %2 = vector.extract_strided_slice %1 {offsets = [0, 0], sizes = [4, 4], strides = [1, 1]} : vector<4x9xf32> to vector<4x4xf32>
    %3 = vector.extract_strided_slice %1 {offsets = [0, 4], sizes = [4, 4], strides = [1, 1]} : vector<4x9xf32> to vector<4x4xf32>
    %4 = vector.extract_strided_slice %1 {offsets = [0, 8], sizes = [4, 1], strides = [1, 1]} : vector<4x9xf32> to vector<4x1xf32>
    %5 = vector.extract_strided_slice %2 {offsets = [0, 0], sizes = [1, 4], strides = [1, 1]} : vector<4x4xf32> to vector<1x4xf32>
    %6 = vector.extract_strided_slice %3 {offsets = [0, 0], sizes = [1, 4], strides = [1, 1]} : vector<4x4xf32> to vector<1x4xf32>
    %7 = vector.extract_strided_slice %4 {offsets = [0, 0], sizes = [1, 1], strides = [1, 1]} : vector<4x1xf32> to vector<1x1xf32>
    %8 = vector.broadcast %5 : vector<1x4xf32> to vector<8x4xf32>
    %9 = arith.mulf %0, %8 : vector<8x4xf32>
    %cst = arith.constant dense<0.000000e+00> : vector<8xf32>
    %10 = vector.multi_reduction <add>, %9, %cst [1] : vector<8x4xf32> to vector<8xf32>
    %11 = vector.shape_cast %10 : vector<8xf32> to vector<8x1xf32>
    %12 = vector.broadcast %7 : vector<1x1xf32> to vector<8x1xf32>
    %13 = arith.addf %11, %12 : vector<8x1xf32>
    %14 = math.tanh %13 : vector<8x1xf32>
    %15 = arith.mulf %14, %14 : vector<8x1xf32>
    %cst_3 = arith.constant 1.000000e+00 : f32
    %16 = vector.broadcast %cst_3 : f32 to vector<8x1xf32>
    %17 = arith.subf %16, %15 : vector<8x1xf32>
    %18 = vector.broadcast %17 : vector<8x1xf32> to vector<8x4xf32>
    %19 = vector.broadcast %5 : vector<1x4xf32> to vector<8x4xf32>
    %20 = arith.mulf %18, %19 : vector<8x4xf32>
    %21 = vector.broadcast %6 : vector<1x4xf32> to vector<8x4xf32>
    %22 = arith.mulf %20, %21 : vector<8x4xf32>
    %cst_4 = arith.constant dense<0.000000e+00> : vector<8xf32>
    %23 = vector.multi_reduction <add>, %22, %cst_4 [1] : vector<8x4xf32> to vector<8xf32>
    %24 = vector.shape_cast %23 : vector<8xf32> to vector<8x1xf32>
    %cst_5 = arith.constant 1.000000e+00 : f32
    %25 = vector.broadcast %cst_5 : f32 to vector<8x1xf32>
    %26 = arith.addf %25, %24 : vector<8x1xf32>
    %27 = math.absf %26 : vector<8x1xf32>
    %cst_6 = arith.constant 9.99999971E-10 : f32
    %28 = vector.broadcast %cst_6 : f32 to vector<8x1xf32>
    %29 = arith.addf %27, %28 : vector<8x1xf32>
    %30 = math.log %29 : vector<8x1xf32>
    %31 = vector.broadcast %6 : vector<1x4xf32> to vector<8x4xf32>
    %32 = vector.broadcast %14 : vector<8x1xf32> to vector<8x4xf32>
    %33 = arith.mulf %31, %32 : vector<8x4xf32>
    %34 = arith.addf %0, %33 : vector<8x4xf32>
    %35 = vector.extract_strided_slice %2 {offsets = [1, 0], sizes = [1, 4], strides = [1, 1]} : vector<4x4xf32> to vector<1x4xf32>
    %36 = vector.extract_strided_slice %3 {offsets = [1, 0], sizes = [1, 4], strides = [1, 1]} : vector<4x4xf32> to vector<1x4xf32>
    %37 = vector.extract_strided_slice %4 {offsets = [1, 0], sizes = [1, 1], strides = [1, 1]} : vector<4x1xf32> to vector<1x1xf32>
    %38 = vector.broadcast %35 : vector<1x4xf32> to vector<8x4xf32>
    %39 = arith.mulf %34, %38 : vector<8x4xf32>
    %cst_7 = arith.constant dense<0.000000e+00> : vector<8xf32>
    %40 = vector.multi_reduction <add>, %39, %cst_7 [1] : vector<8x4xf32> to vector<8xf32>
    %41 = vector.shape_cast %40 : vector<8xf32> to vector<8x1xf32>
    %42 = vector.broadcast %37 : vector<1x1xf32> to vector<8x1xf32>
    %43 = arith.addf %41, %42 : vector<8x1xf32>
    %44 = math.tanh %43 : vector<8x1xf32>
    %45 = arith.mulf %44, %44 : vector<8x1xf32>
    %cst_8 = arith.constant 1.000000e+00 : f32
    %46 = vector.broadcast %cst_8 : f32 to vector<8x1xf32>
    %47 = arith.subf %46, %45 : vector<8x1xf32>
    %48 = vector.broadcast %47 : vector<8x1xf32> to vector<8x4xf32>
    %49 = vector.broadcast %35 : vector<1x4xf32> to vector<8x4xf32>
    %50 = arith.mulf %48, %49 : vector<8x4xf32>
    %51 = vector.broadcast %36 : vector<1x4xf32> to vector<8x4xf32>
    %52 = arith.mulf %50, %51 : vector<8x4xf32>
    %cst_9 = arith.constant dense<0.000000e+00> : vector<8xf32>
    %53 = vector.multi_reduction <add>, %52, %cst_9 [1] : vector<8x4xf32> to vector<8xf32>
    %54 = vector.shape_cast %53 : vector<8xf32> to vector<8x1xf32>
    %cst_10 = arith.constant 1.000000e+00 : f32
    %55 = vector.broadcast %cst_10 : f32 to vector<8x1xf32>
    %56 = arith.addf %55, %54 : vector<8x1xf32>
    %57 = math.absf %56 : vector<8x1xf32>
    %cst_11 = arith.constant 9.99999971E-10 : f32
    %58 = vector.broadcast %cst_11 : f32 to vector<8x1xf32>
    %59 = arith.addf %57, %58 : vector<8x1xf32>
    %60 = math.log %59 : vector<8x1xf32>
    %61 = vector.broadcast %36 : vector<1x4xf32> to vector<8x4xf32>
    %62 = vector.broadcast %44 : vector<8x1xf32> to vector<8x4xf32>
    %63 = arith.mulf %61, %62 : vector<8x4xf32>
    %64 = arith.addf %34, %63 : vector<8x4xf32>
    %65 = vector.extract_strided_slice %2 {offsets = [2, 0], sizes = [1, 4], strides = [1, 1]} : vector<4x4xf32> to vector<1x4xf32>
    %66 = vector.extract_strided_slice %3 {offsets = [2, 0], sizes = [1, 4], strides = [1, 1]} : vector<4x4xf32> to vector<1x4xf32>
    %67 = vector.extract_strided_slice %4 {offsets = [2, 0], sizes = [1, 1], strides = [1, 1]} : vector<4x1xf32> to vector<1x1xf32>
    %68 = vector.broadcast %65 : vector<1x4xf32> to vector<8x4xf32>
    %69 = arith.mulf %64, %68 : vector<8x4xf32>
    %cst_12 = arith.constant dense<0.000000e+00> : vector<8xf32>
    %70 = vector.multi_reduction <add>, %69, %cst_12 [1] : vector<8x4xf32> to vector<8xf32>
    %71 = vector.shape_cast %70 : vector<8xf32> to vector<8x1xf32>
    %72 = vector.broadcast %67 : vector<1x1xf32> to vector<8x1xf32>
    %73 = arith.addf %71, %72 : vector<8x1xf32>
    %74 = math.tanh %73 : vector<8x1xf32>
    %75 = arith.mulf %74, %74 : vector<8x1xf32>
    %cst_13 = arith.constant 1.000000e+00 : f32
    %76 = vector.broadcast %cst_13 : f32 to vector<8x1xf32>
    %77 = arith.subf %76, %75 : vector<8x1xf32>
    %78 = vector.broadcast %77 : vector<8x1xf32> to vector<8x4xf32>
    %79 = vector.broadcast %65 : vector<1x4xf32> to vector<8x4xf32>
    %80 = arith.mulf %78, %79 : vector<8x4xf32>
    %81 = vector.broadcast %66 : vector<1x4xf32> to vector<8x4xf32>
    %82 = arith.mulf %80, %81 : vector<8x4xf32>
    %cst_14 = arith.constant dense<0.000000e+00> : vector<8xf32>
    %83 = vector.multi_reduction <add>, %82, %cst_14 [1] : vector<8x4xf32> to vector<8xf32>
    %84 = vector.shape_cast %83 : vector<8xf32> to vector<8x1xf32>
    %cst_15 = arith.constant 1.000000e+00 : f32
    %85 = vector.broadcast %cst_15 : f32 to vector<8x1xf32>
    %86 = arith.addf %85, %84 : vector<8x1xf32>
    %87 = math.absf %86 : vector<8x1xf32>
    %cst_16 = arith.constant 9.99999971E-10 : f32
    %88 = vector.broadcast %cst_16 : f32 to vector<8x1xf32>
    %89 = arith.addf %87, %88 : vector<8x1xf32>
    %90 = math.log %89 : vector<8x1xf32>
    %91 = vector.broadcast %66 : vector<1x4xf32> to vector<8x4xf32>
    %92 = vector.broadcast %74 : vector<8x1xf32> to vector<8x4xf32>
    %93 = arith.mulf %91, %92 : vector<8x4xf32>
    %94 = arith.addf %64, %93 : vector<8x4xf32>
    %95 = vector.extract_strided_slice %2 {offsets = [3, 0], sizes = [1, 4], strides = [1, 1]} : vector<4x4xf32> to vector<1x4xf32>
    %96 = vector.extract_strided_slice %3 {offsets = [3, 0], sizes = [1, 4], strides = [1, 1]} : vector<4x4xf32> to vector<1x4xf32>
    %97 = vector.extract_strided_slice %4 {offsets = [3, 0], sizes = [1, 1], strides = [1, 1]} : vector<4x1xf32> to vector<1x1xf32>
    %98 = vector.broadcast %95 : vector<1x4xf32> to vector<8x4xf32>
    %99 = arith.mulf %94, %98 : vector<8x4xf32>
    %cst_17 = arith.constant dense<0.000000e+00> : vector<8xf32>
    %100 = vector.multi_reduction <add>, %99, %cst_17 [1] : vector<8x4xf32> to vector<8xf32>
    %101 = vector.shape_cast %100 : vector<8xf32> to vector<8x1xf32>
    %102 = vector.broadcast %97 : vector<1x1xf32> to vector<8x1xf32>
    %103 = arith.addf %101, %102 : vector<8x1xf32>
    %104 = math.tanh %103 : vector<8x1xf32>
    %105 = arith.mulf %104, %104 : vector<8x1xf32>
    %cst_18 = arith.constant 1.000000e+00 : f32
    %106 = vector.broadcast %cst_18 : f32 to vector<8x1xf32>
    %107 = arith.subf %106, %105 : vector<8x1xf32>
    %108 = vector.broadcast %107 : vector<8x1xf32> to vector<8x4xf32>
    %109 = vector.broadcast %95 : vector<1x4xf32> to vector<8x4xf32>
    %110 = arith.mulf %108, %109 : vector<8x4xf32>
    %111 = vector.broadcast %96 : vector<1x4xf32> to vector<8x4xf32>
    %112 = arith.mulf %110, %111 : vector<8x4xf32>
    %cst_19 = arith.constant dense<0.000000e+00> : vector<8xf32>
    %113 = vector.multi_reduction <add>, %112, %cst_19 [1] : vector<8x4xf32> to vector<8xf32>
    %114 = vector.shape_cast %113 : vector<8xf32> to vector<8x1xf32>
    %cst_20 = arith.constant 1.000000e+00 : f32
    %115 = vector.broadcast %cst_20 : f32 to vector<8x1xf32>
    %116 = arith.addf %115, %114 : vector<8x1xf32>
    %117 = math.absf %116 : vector<8x1xf32>
    %cst_21 = arith.constant 9.99999971E-10 : f32
    %118 = vector.broadcast %cst_21 : f32 to vector<8x1xf32>
    %119 = arith.addf %117, %118 : vector<8x1xf32>
    %120 = math.log %119 : vector<8x1xf32>
    %121 = vector.broadcast %96 : vector<1x4xf32> to vector<8x4xf32>
    %122 = vector.broadcast %104 : vector<8x1xf32> to vector<8x4xf32>
    %123 = arith.mulf %121, %122 : vector<8x4xf32>
    %124 = arith.addf %94, %123 : vector<8x4xf32>
    %125 = tpu.concatenate %30, %60, %90, %120 in 1 : vector<8x1xf32>, vector<8x1xf32>, vector<8x1xf32>, vector<8x1xf32> -> vector<8x4xf32>
    %c0_22 = arith.constant 0 : index
    %c0_23 = arith.constant 0 : index
    %126 = vector.load %arg3[%c0_22, %c0_23] : memref<17x8xf32, #tpu.memory_space<vmem>>, vector<17x8xf32>
    %127 = vector.extract_strided_slice %126 {offsets = [0, 0], sizes = [3, 6], strides = [1, 1]} : vector<17x8xf32> to vector<3x6xf32>
    %128 = vector.extract_strided_slice %126 {offsets = [3, 0], sizes = [1, 6], strides = [1, 1]} : vector<17x8xf32> to vector<1x6xf32>
    %129 = vector.extract_strided_slice %126 {offsets = [4, 0], sizes = [6, 5], strides = [1, 1]} : vector<17x8xf32> to vector<6x5xf32>
    %130 = vector.extract_strided_slice %126 {offsets = [10, 0], sizes = [1, 5], strides = [1, 1]} : vector<17x8xf32> to vector<1x5xf32>
    %131 = vector.extract_strided_slice %126 {offsets = [11, 0], sizes = [5, 8], strides = [1, 1]} : vector<17x8xf32> to vector<5x8xf32>
    %132 = vector.extract_strided_slice %126 {offsets = [16, 0], sizes = [1, 8], strides = [1, 1]} : vector<17x8xf32> to vector<1x8xf32>
    %c0_24 = arith.constant 0 : index
    %c0_25 = arith.constant 0 : index
    %133 = vector.load %arg1[%c0_24, %c0_25] : memref<8x3xf32, #tpu.memory_space<vmem>>, vector<8x3xf32>
    %134 = vector.extract_strided_slice %133 {offsets = [0, 0], sizes = [8, 1], strides = [1, 1]} : vector<8x3xf32> to vector<8x1xf32>
    %135 = vector.extract_strided_slice %127 {offsets = [0, 0], sizes = [1, 6], strides = [1, 1]} : vector<3x6xf32> to vector<1x6xf32>
    %136 = vector.broadcast %134 : vector<8x1xf32> to vector<8x6xf32>
    %137 = vector.broadcast %135 : vector<1x6xf32> to vector<8x6xf32>
    %138 = arith.mulf %136, %137 : vector<8x6xf32>
    %139 = vector.broadcast %128 : vector<1x6xf32> to vector<8x6xf32>
    %140 = arith.addf %138, %139 : vector<8x6xf32>
    %141 = vector.extract_strided_slice %133 {offsets = [0, 1], sizes = [8, 1], strides = [1, 1]} : vector<8x3xf32> to vector<8x1xf32>
    %142 = vector.extract_strided_slice %127 {offsets = [1, 0], sizes = [1, 6], strides = [1, 1]} : vector<3x6xf32> to vector<1x6xf32>
    %143 = vector.broadcast %141 : vector<8x1xf32> to vector<8x6xf32>
    %144 = vector.broadcast %142 : vector<1x6xf32> to vector<8x6xf32>
    %145 = arith.mulf %143, %144 : vector<8x6xf32>
    %146 = arith.addf %140, %145 : vector<8x6xf32>
    %147 = vector.extract_strided_slice %133 {offsets = [0, 2], sizes = [8, 1], strides = [1, 1]} : vector<8x3xf32> to vector<8x1xf32>
    %148 = vector.extract_strided_slice %127 {offsets = [2, 0], sizes = [1, 6], strides = [1, 1]} : vector<3x6xf32> to vector<1x6xf32>
    %149 = vector.broadcast %147 : vector<8x1xf32> to vector<8x6xf32>
    %150 = vector.broadcast %148 : vector<1x6xf32> to vector<8x6xf32>
    %151 = arith.mulf %149, %150 : vector<8x6xf32>
    %152 = arith.addf %146, %151 : vector<8x6xf32>
    %cst_26 = arith.constant 0.000000e+00 : f32
    %153 = vector.broadcast %cst_26 : f32 to vector<8x6xf32>
    %154 = arith.maximumf %152, %153 : vector<8x6xf32>
    %155 = vector.extract_strided_slice %154 {offsets = [0, 0], sizes = [8, 1], strides = [1, 1]} : vector<8x6xf32> to vector<8x1xf32>
    %156 = vector.extract_strided_slice %129 {offsets = [0, 0], sizes = [1, 5], strides = [1, 1]} : vector<6x5xf32> to vector<1x5xf32>
    %157 = vector.broadcast %155 : vector<8x1xf32> to vector<8x5xf32>
    %158 = vector.broadcast %156 : vector<1x5xf32> to vector<8x5xf32>
    %159 = arith.mulf %157, %158 : vector<8x5xf32>
    %160 = vector.broadcast %130 : vector<1x5xf32> to vector<8x5xf32>
    %161 = arith.addf %159, %160 : vector<8x5xf32>
    %162 = vector.extract_strided_slice %154 {offsets = [0, 1], sizes = [8, 1], strides = [1, 1]} : vector<8x6xf32> to vector<8x1xf32>
    %163 = vector.extract_strided_slice %129 {offsets = [1, 0], sizes = [1, 5], strides = [1, 1]} : vector<6x5xf32> to vector<1x5xf32>
    %164 = vector.broadcast %162 : vector<8x1xf32> to vector<8x5xf32>
    %165 = vector.broadcast %163 : vector<1x5xf32> to vector<8x5xf32>
    %166 = arith.mulf %164, %165 : vector<8x5xf32>
    %167 = arith.addf %161, %166 : vector<8x5xf32>
    %168 = vector.extract_strided_slice %154 {offsets = [0, 2], sizes = [8, 1], strides = [1, 1]} : vector<8x6xf32> to vector<8x1xf32>
    %169 = vector.extract_strided_slice %129 {offsets = [2, 0], sizes = [1, 5], strides = [1, 1]} : vector<6x5xf32> to vector<1x5xf32>
    %170 = vector.broadcast %168 : vector<8x1xf32> to vector<8x5xf32>
    %171 = vector.broadcast %169 : vector<1x5xf32> to vector<8x5xf32>
    %172 = arith.mulf %170, %171 : vector<8x5xf32>
    %173 = arith.addf %167, %172 : vector<8x5xf32>
    %174 = vector.extract_strided_slice %154 {offsets = [0, 3], sizes = [8, 1], strides = [1, 1]} : vector<8x6xf32> to vector<8x1xf32>
    %175 = vector.extract_strided_slice %129 {offsets = [3, 0], sizes = [1, 5], strides = [1, 1]} : vector<6x5xf32> to vector<1x5xf32>
    %176 = vector.broadcast %174 : vector<8x1xf32> to vector<8x5xf32>
    %177 = vector.broadcast %175 : vector<1x5xf32> to vector<8x5xf32>
    %178 = arith.mulf %176, %177 : vector<8x5xf32>
    %179 = arith.addf %173, %178 : vector<8x5xf32>
    %180 = vector.extract_strided_slice %154 {offsets = [0, 4], sizes = [8, 1], strides = [1, 1]} : vector<8x6xf32> to vector<8x1xf32>
    %181 = vector.extract_strided_slice %129 {offsets = [4, 0], sizes = [1, 5], strides = [1, 1]} : vector<6x5xf32> to vector<1x5xf32>
    %182 = vector.broadcast %180 : vector<8x1xf32> to vector<8x5xf32>
    %183 = vector.broadcast %181 : vector<1x5xf32> to vector<8x5xf32>
    %184 = arith.mulf %182, %183 : vector<8x5xf32>
    %185 = arith.addf %179, %184 : vector<8x5xf32>
    %186 = vector.extract_strided_slice %154 {offsets = [0, 5], sizes = [8, 1], strides = [1, 1]} : vector<8x6xf32> to vector<8x1xf32>
    %187 = vector.extract_strided_slice %129 {offsets = [5, 0], sizes = [1, 5], strides = [1, 1]} : vector<6x5xf32> to vector<1x5xf32>
    %188 = vector.broadcast %186 : vector<8x1xf32> to vector<8x5xf32>
    %189 = vector.broadcast %187 : vector<1x5xf32> to vector<8x5xf32>
    %190 = arith.mulf %188, %189 : vector<8x5xf32>
    %191 = arith.addf %185, %190 : vector<8x5xf32>
    %cst_27 = arith.constant 0.000000e+00 : f32
    %192 = vector.broadcast %cst_27 : f32 to vector<8x5xf32>
    %193 = arith.maximumf %191, %192 : vector<8x5xf32>
    %194 = vector.extract_strided_slice %193 {offsets = [0, 0], sizes = [8, 1], strides = [1, 1]} : vector<8x5xf32> to vector<8x1xf32>
    %195 = vector.extract_strided_slice %131 {offsets = [0, 0], sizes = [1, 8], strides = [1, 1]} : vector<5x8xf32> to vector<1x8xf32>
    %196 = vector.broadcast %194 : vector<8x1xf32> to vector<8x8xf32>
    %197 = vector.broadcast %195 : vector<1x8xf32> to vector<8x8xf32>
    %198 = arith.mulf %196, %197 : vector<8x8xf32>
    %199 = vector.broadcast %132 : vector<1x8xf32> to vector<8x8xf32>
    %200 = arith.addf %198, %199 : vector<8x8xf32>
    %201 = vector.extract_strided_slice %193 {offsets = [0, 1], sizes = [8, 1], strides = [1, 1]} : vector<8x5xf32> to vector<8x1xf32>
    %202 = vector.extract_strided_slice %131 {offsets = [1, 0], sizes = [1, 8], strides = [1, 1]} : vector<5x8xf32> to vector<1x8xf32>
    %203 = vector.broadcast %201 : vector<8x1xf32> to vector<8x8xf32>
    %204 = vector.broadcast %202 : vector<1x8xf32> to vector<8x8xf32>
    %205 = arith.mulf %203, %204 : vector<8x8xf32>
    %206 = arith.addf %200, %205 : vector<8x8xf32>
    %207 = vector.extract_strided_slice %193 {offsets = [0, 2], sizes = [8, 1], strides = [1, 1]} : vector<8x5xf32> to vector<8x1xf32>
    %208 = vector.extract_strided_slice %131 {offsets = [2, 0], sizes = [1, 8], strides = [1, 1]} : vector<5x8xf32> to vector<1x8xf32>
    %209 = vector.broadcast %207 : vector<8x1xf32> to vector<8x8xf32>
    %210 = vector.broadcast %208 : vector<1x8xf32> to vector<8x8xf32>
    %211 = arith.mulf %209, %210 : vector<8x8xf32>
    %212 = arith.addf %206, %211 : vector<8x8xf32>
    %213 = vector.extract_strided_slice %193 {offsets = [0, 3], sizes = [8, 1], strides = [1, 1]} : vector<8x5xf32> to vector<8x1xf32>
    %214 = vector.extract_strided_slice %131 {offsets = [3, 0], sizes = [1, 8], strides = [1, 1]} : vector<5x8xf32> to vector<1x8xf32>
    %215 = vector.broadcast %213 : vector<8x1xf32> to vector<8x8xf32>
    %216 = vector.broadcast %214 : vector<1x8xf32> to vector<8x8xf32>
    %217 = arith.mulf %215, %216 : vector<8x8xf32>
    %218 = arith.addf %212, %217 : vector<8x8xf32>
    %219 = vector.extract_strided_slice %193 {offsets = [0, 4], sizes = [8, 1], strides = [1, 1]} : vector<8x5xf32> to vector<8x1xf32>
    %220 = vector.extract_strided_slice %131 {offsets = [4, 0], sizes = [1, 8], strides = [1, 1]} : vector<5x8xf32> to vector<1x8xf32>
    %221 = vector.broadcast %219 : vector<8x1xf32> to vector<8x8xf32>
    %222 = vector.broadcast %220 : vector<1x8xf32> to vector<8x8xf32>
    %223 = arith.mulf %221, %222 : vector<8x8xf32>
    %224 = arith.addf %218, %223 : vector<8x8xf32>
    %225 = arith.negf %224 : vector<8x8xf32>
    %226 = math.exp %225 : vector<8x8xf32>
    %cst_28 = arith.constant 1.000000e+00 : f32
    %227 = vector.broadcast %cst_28 : f32 to vector<8x8xf32>
    %228 = arith.addf %227, %226 : vector<8x8xf32>
    %229 = arith.divf %227, %228 : vector<8x8xf32>
    %230 = tpu.iota {dimensions = array<i32: 1>} : vector<1x8xi32>
    %c2_i32 = arith.constant 2 : i32
    %c0_i32 = arith.constant 0 : i32
    %231 = arith.cmpi eq, %c2_i32, %c0_i32 : i32
    %c1_i32 = arith.constant 1 : i32
    %232 = arith.select %231, %c1_i32, %c2_i32 : i32
    %233 = vector.broadcast %232 : i32 to vector<1x8xi32>
    %234 = arith.remsi %230, %233 : vector<1x8xi32>
    %c0_i32_29 = arith.constant 0 : i32
    %235 = vector.broadcast %c0_i32_29 : i32 to vector<1x8xi32>
    %236 = arith.cmpi ne, %234, %235 : vector<1x8xi32>
    %c0_i32_30 = arith.constant 0 : i32
    %237 = vector.broadcast %c0_i32_30 : i32 to vector<1x8xi32>
    %238 = arith.cmpi slt, %234, %237 : vector<1x8xi32>
    %c0_i32_31 = arith.constant 0 : i32
    %239 = arith.cmpi slt, %232, %c0_i32_31 : i32
    %240 = vector.broadcast %239 : i1 to vector<1x8xi1>
    %241 = vector.broadcast %240 : vector<1x8xi1> to vector<1x8xi1>
    %242 = arith.xori %238, %241 : vector<1x8xi1>
    %243 = arith.andi %242, %236 : vector<1x8xi1>
    %244 = vector.broadcast %232 : i32 to vector<1x8xi32>
    %245 = arith.addi %234, %244 : vector<1x8xi32>
    %246 = arith.select %243, %245, %234 : vector<1x8xi1>, vector<1x8xi32>
    %c0_i32_32 = arith.constant 0 : i32
    %247 = vector.broadcast %c0_i32_32 : i32 to vector<1x8xi32>
    %248 = arith.cmpi eq, %246, %247 : vector<1x8xi32>
    %cst_33 = arith.constant 0.000000e+00 : f32
    %249 = vector.broadcast %cst_33 : f32 to vector<8x8xf32>
    %250 = arith.subf %249, %229 : vector<8x8xf32>
    %251 = vector.shape_cast %248 : vector<1x8xi1> to vector<1x8xi1>
    %252 = vector.broadcast %251 : vector<1x8xi1> to vector<8x8xi1>
    %253 = arith.select %252, %250, %229 : vector<8x8xi1>, vector<8x8xf32>
    %254 = arith.mulf %124, %124 : vector<8x4xf32>
    %255 = tpu.concatenate %124, %254, %253, %125 in 1 : vector<8x4xf32>, vector<8x4xf32>, vector<8x8xf32>, vector<8x4xf32> -> vector<8x20xf32>
    %c0_34 = arith.constant 0 : index
    %c0_35 = arith.constant 0 : index
    %256 = vector.load %arg4[%c0_34, %c0_35] : memref<8x20xf32, #tpu.memory_space<vmem>>, vector<8x20xf32>
    tpu.vector_store %arg4[%c0_34, %c0_35], %255 {strides = array<i32>} : memref<8x20xf32, #tpu.memory_space<vmem>>, vector<8x20xf32>,
    return
  }
}

</mosaic_0001>

<llo_original>
// kernel: iflow_forward.1
$region0: #{iflow_forward.1}
  #allocation0 [shape = 'u32[]', space=smem, size = 0x4, offset = 0x4, fixed_abs, tag = 'smem constant byte address 0x4 - core index']
  #allocation1 [shape = 'u32[144,128]{1,0:T(1,128)}', space=vmem, size = 0x12000, scoped, tag = 'internal scratch']
  %s0 = inlined_call_operand.vmem [shape: f32[8,4], index: 0, kind: input, shape index: {}]
  %s1 = inlined_call_operand.vmem [shape: f32[8,3], index: 1, kind: input, shape index: {}]
  %s2 = inlined_call_operand.vmem [shape: f32[4,9], index: 2, kind: input, shape index: {}]
  %s3 = inlined_call_operand.vmem [shape: f32[17,8], index: 3, kind: input, shape index: {}]
  %s4 = inlined_call_operand.vmem [shape: f32[8,20], index: 4, kind: output, shape index: {}]
  %s5 = sld [smem:[#allocation0]]
  $region26: #{iflow_forward.1} parent=0
    _
  %s7 = ssub.s32 1, %s5
  %s8 = scalar_select 0, %s7, %s5
  // Predicated region
  $region2: #{iflow_forward.1} parent=0 // pred_check
    _
  $region3: #{iflow_forward.1} parent=0 // pred_check_branch
    %10 = sbr.rel (0) target = $region5
  $region4: #{iflow_forward.1} parent=0 // pred_region
    _
  $region5: #{iflow_forward.1} parent=0 // pred_fallthru
    _
  // Predicated region
  $region6: #{iflow_forward.1} parent=0 // pred_check
    _
  $region7: #{iflow_forward.1} parent=0 // pred_check_branch
    %12 = sbr.rel (0) target = $region9
  $region8: #{iflow_forward.1} parent=0 // pred_region
    _
  $region9: #{iflow_forward.1} parent=0 // pred_fallthru
    _
  // Predicated region
  $region10: #{iflow_forward.1} parent=0 // pred_check
    _
  $region11: #{iflow_forward.1} parent=0 // pred_check_branch
    %14 = sbr.rel (0) target = $region13
  $region12: #{iflow_forward.1} parent=0 // pred_region
    _
  $region13: #{iflow_forward.1} parent=0 // pred_fallthru
    _
  // Predicated region
  $region14: #{iflow_forward.1} parent=0 // pred_check
    _
  $region15: #{iflow_forward.1} parent=0 // pred_check_branch
    %16 = sbr.rel (0) target = $region17
  $region16: #{iflow_forward.1} parent=0 // pred_region
    _
  $region17: #{iflow_forward.1} parent=0 // pred_fallthru
    _
  %v17 = vld [vmem:[%s0] sm:$0xff]
  %v18 = vld [vmem:[%s2] sm:$0xf]
  %v19 = vlaneseq
  %v20 = vshrl.u32 %v19, 7
  %v21 = vsub.s32 0, %v20
  %v22 = vrot.slane %v18, %v21
  %v23 = vmul.f32 %v17, %v22
  %vm24 = vcmask 31744
  %v25 = vsel %vm24, %v23, 0.0
  %26 = vadd.xlane.f32.xlu0 %v25
  %v27 = vpop.xlane.xlu0 %26
  %v28 = vadd.f32 %v27, %v22
  %v29 = vtanh.pop %v28
  %v30 = vmul.f32 %v29, %v29
  %v31 = vsub.f32 1.0, %v30
  %33 = vset.pattern.permute.xlu0 8
  %34 = vperm.xlu0 %33, %v31
  %v35 = vpop.permute.xlu0 %34
  %v37 = vmul.f32 %v35, %v22
  %39 = vrot.lane.b32.xlu0 %v22, 124
  %v40 = vpop.permute.xlu0 %39
  %v42 = vmul.f32 %v37, %v40
  %v43 = vsel %vm24, %v42, 0.0
  %44 = vadd.xlane.f32.xlu0 %v43
  %v45 = vpop.xlane.xlu0 %44
  %v46 = vadd.f32 %v45, 1.0
  %v47 = vand.u32 2147483647, %v46
  %v48 = vadd.f32 %v47, 1e-09
  %v49 = vlog2.pop %v48
  %v50 = vmul.f32 %v49, 0.6931472
  %52 = vset.pattern.permute.xlu0 8
  %53 = vperm.xlu0 %52, %v29
  %v54 = vpop.permute.xlu0 %53
  %v56 = vmul.f32 %v22, %v54
  %58 = vrot.lane.b32.xlu0 %v56, 124
  %v59 = vpop.permute.xlu0 %58
  %v61 = vadd.f32 %v17, %v59
  %v62 = vlaneseq
  %v63 = vshrl.u32 %v62, 7
  %v64 = vsub.s32 1, %v63
  %v65 = vrot.slane %v18, %v64
  %v66 = vmul.f32 %v61, %v65
  %v67 = vsel %vm24, %v66, 0.0
  %68 = vadd.xlane.f32.xlu0 %v67
  %v69 = vpop.xlane.xlu0 %68
  %v70 = vadd.f32 %v69, %v65
  %v71 = vtanh.pop %v70
  %v72 = vmul.f32 %v71, %v71
  %v73 = vsub.f32 1.0, %v72
  %75 = vset.pattern.permute.xlu0 8
  %76 = vperm.xlu0 %75, %v73
  %v77 = vpop.permute.xlu0 %76
  %v79 = vmul.f32 %v77, %v65
  %81 = vrot.lane.b32.xlu0 %v65, 124
  %v82 = vpop.permute.xlu0 %81
  %v84 = vmul.f32 %v79, %v82
  %v85 = vsel %vm24, %v84, 0.0
  %86 = vadd.xlane.f32.xlu0 %v85
  %v87 = vpop.xlane.xlu0 %86
  %v88 = vadd.f32 %v87, 1.0
  %v89 = vand.u32 2147483647, %v88
  %v90 = vadd.f32 %v89, 1e-09
  %v91 = vlog2.pop %v90
  %v92 = vmul.f32 %v91, 0.6931472
  %94 = vset.pattern.permute.xlu0 8
  %95 = vperm.xlu0 %94, %v71
  %v96 = vpop.permute.xlu0 %95
  %v98 = vmul.f32 %v65, %v96
  %100 = vrot.lane.b32.xlu0 %v98, 124
  %v101 = vpop.permute.xlu0 %100
  %v103 = vadd.f32 %v61, %v101
  %v104 = vlaneseq
  %v105 = vshrl.u32 %v104, 7
  %v106 = vsub.s32 2, %v105
  %v107 = vrot.slane %v18, %v106
  %v108 = vmul.f32 %v103, %v107
  %v109 = vsel %vm24, %v108, 0.0
  %110 = vadd.xlane.f32.xlu0 %v109
  %v111 = vpop.xlane.xlu0 %110
  %v112 = vadd.f32 %v111, %v107
  %v113 = vtanh.pop %v112
  %v114 = vmul.f32 %v113, %v113
  %v115 = vsub.f32 1.0, %v114
  %117 = vset.pattern.permute.xlu0 8
  %118 = vperm.xlu0 %117, %v115
  %v119 = vpop.permute.xlu0 %118
  %v121 = vmul.f32 %v119, %v107
  %123 = vrot.lane.b32.xlu0 %v107, 124
  %v124 = vpop.permute.xlu0 %123
  %v126 = vmul.f32 %v121, %v124
  %v127 = vsel %vm24, %v126, 0.0
  %128 = vadd.xlane.f32.xlu0 %v127
  %v129 = vpop.xlane.xlu0 %128
  %v130 = vadd.f32 %v129, 1.0
  %v131 = vand.u32 2147483647, %v130
  %v132 = vadd.f32 %v131, 1e-09
  %v133 = vlog2.pop %v132
  %v134 = vmul.f32 %v133, 0.6931472
  %136 = vset.pattern.permute.xlu0 8
  %137 = vperm.xlu0 %136, %v113
  %v138 = vpop.permute.xlu0 %137
  %v140 = vmul.f32 %v107, %v138
  %142 = vrot.lane.b32.xlu0 %v140, 124
  %v143 = vpop.permute.xlu0 %142
  %v145 = vadd.f32 %v103, %v143
  %v146 = vlaneseq
  %v147 = vshrl.u32 %v146, 7
  %v148 = vsub.s32 3, %v147
  %v149 = vrot.slane %v18, %v148
  %v150 = vmul.f32 %v145, %v149
  %v151 = vsel %vm24, %v150, 0.0
  %152 = vadd.xlane.f32.xlu0 %v151
  %v153 = vpop.xlane.xlu0 %152
  %v154 = vadd.f32 %v153, %v149
  %v155 = vtanh.pop %v154
  %v156 = vmul.f32 %v155, %v155
  %v157 = vsub.f32 1.0, %v156
  %159 = vset.pattern.permute.xlu0 8
  %160 = vperm.xlu0 %159, %v157
  %v161 = vpop.permute.xlu0 %160
  %v163 = vmul.f32 %v161, %v149
  %165 = vrot.lane.b32.xlu0 %v149, 124
  %v166 = vpop.permute.xlu0 %165
  %v168 = vmul.f32 %v163, %v166
  %v169 = vsel %vm24, %v168, 0.0
  %170 = vadd.xlane.f32.xlu0 %v169
  %v171 = vpop.xlane.xlu0 %170
  %v172 = vadd.f32 %v171, 1.0
  %v173 = vand.u32 2147483647, %v172
  %v174 = vadd.f32 %v173, 1e-09
  %v175 = vlog2.pop %v174
  %v176 = vmul.f32 %v175, 0.6931472
  %178 = vset.pattern.permute.xlu0 8
  %179 = vperm.xlu0 %178, %v155
  %v180 = vpop.permute.xlu0 %179
  %v182 = vmul.f32 %v149, %v180
  %184 = vrot.lane.b32.xlu0 %v182, 124
  %v185 = vpop.permute.xlu0 %184
  %v187 = vadd.f32 %v145, %v185
  %vm188 = vcmask 7168
  %v189 = vsel %vm188, %v50, %v92
  %vm190 = vcmask 15360
  %v191 = vsel %vm190, %v189, %v134
  %vm192 = vcmask 23552
  %v193 = vsel %vm192, %v191, %v176
  %v194 = vld [vmem:[%s3] sm:$0xff]
  %v195 = vld [vmem:[%s3 + $0x8] sm:$0xff]
  %v196 = vld [vmem:[%s3 + $0x10] sm:$0x1]
  %v197 = vld [vmem:[%s1] sm:$0xff]
  %199 = vset.pattern.permute.xlu0 0
  %200 = vperm.xlu0 %199, %v197
  %v201 = vpop.permute.xlu0 %200
  %v203 = vlaneseq
  %v204 = vshrl.u32 %v203, 7
  %v205 = vsub.s32 0, %v204
  %v206 = vrot.slane %v194, %v205
  %v207 = vmul.f32 %v201, %v206
  %v208 = vlaneseq
  %v209 = vshrl.u32 %v208, 7
  %v210 = vsub.s32 3, %v209
  %v211 = vrot.slane %v194, %v210
  %v212 = vadd.f32 %v207, %v211
  %213 = vset.pattern.permute.xlu0 1
  %214 = vperm.xlu0 %213, %v197
  %v215 = vpop.permute.xlu0 %214
  %v217 = vlaneseq
  %v218 = vshrl.u32 %v217, 7
  %v219 = vsub.s32 1, %v218
  %v220 = vrot.slane %v194, %v219
  %v221 = vmul.f32 %v215, %v220
  %v222 = vadd.f32 %v212, %v221
  %223 = vset.pattern.permute.xlu0 2
  %224 = vperm.xlu0 %223, %v197
  %v225 = vpop.permute.xlu0 %224
  %v227 = vlaneseq
  %v228 = vshrl.u32 %v227, 7
  %v229 = vsub.s32 2, %v228
  %v230 = vrot.slane %v194, %v229
  %v231 = vmul.f32 %v225, %v230
  %v232 = vadd.f32 %v222, %v231
  %v233 = vmax.f32 %v232, 0.0
  %235 = vset.pattern.permute.xlu0 0
  %236 = vperm.xlu0 %235, %v233
  %v237 = vpop.permute.xlu0 %236
  %v239 = vlaneseq
  %v240 = vshrl.u32 %v239, 7
  %v241 = vsub.s32 4, %v240
  %v242 = vrot.slane %v194, %v241
  %v243 = vmul.f32 %v237, %v242
  %v244 = vlaneseq
  %v245 = vshrl.u32 %v244, 7
  %v246 = vsub.s32 2, %v245
  %v247 = vrot.slane %v195, %v246
  %v248 = vadd.f32 %v243, %v247
  %249 = vset.pattern.permute.xlu0 1
  %250 = vperm.xlu0 %249, %v233
  %v251 = vpop.permute.xlu0 %250
  %v253 = vlaneseq
  %v254 = vshrl.u32 %v253, 7
  %v255 = vsub.s32 5, %v254
  %v256 = vrot.slane %v194, %v255
  %v257 = vmul.f32 %v251, %v256
  %v258 = vadd.f32 %v248, %v257
  %259 = vset.pattern.permute.xlu0 2
  %260 = vperm.xlu0 %259, %v233
  %v261 = vpop.permute.xlu0 %260
  %v263 = vlaneseq
  %v264 = vshrl.u32 %v263, 7
  %v265 = vsub.s32 6, %v264
  %v266 = vrot.slane %v194, %v265
  %v267 = vmul.f32 %v261, %v266
  %v268 = vadd.f32 %v258, %v267
  %269 = vset.pattern.permute.xlu0 3
  %270 = vperm.xlu0 %269, %v233
  %v271 = vpop.permute.xlu0 %270
  %v273 = vlaneseq
  %v274 = vshrl.u32 %v273, 7
  %v275 = vsub.s32 7, %v274
  %v276 = vrot.slane %v194, %v275
  %v277 = vmul.f32 %v271, %v276
  %v278 = vadd.f32 %v268, %v277
  %279 = vset.pattern.permute.xlu0 4
  %280 = vperm.xlu0 %279, %v233
  %v281 = vpop.permute.xlu0 %280
  %v283 = vlaneseq
  %v284 = vshrl.u32 %v283, 7
  %v285 = vsub.s32 0, %v284
  %v286 = vrot.slane %v195, %v285
  %v287 = vmul.f32 %v281, %v286
  %v288 = vadd.f32 %v278, %v287
  %289 = vset.pattern.permute.xlu0 5
  %290 = vperm.xlu0 %289, %v233
  %v291 = vpop.permute.xlu0 %290
  %v293 = vlaneseq
  %v294 = vshrl.u32 %v293, 7
  %v295 = vsub.s32 1, %v294
  %v296 = vrot.slane %v195, %v295
  %v297 = vmul.f32 %v291, %v296
  %v298 = vadd.f32 %v288, %v297
  %v299 = vmax.f32 %v298, 0.0
  %301 = vset.pattern.permute.xlu0 0
  %302 = vperm.xlu0 %301, %v299
  %v303 = vpop.permute.xlu0 %302
  %v305 = vlaneseq
  %v306 = vshrl.u32 %v305, 7
  %v307 = vsub.s32 3, %v306
  %v308 = vrot.slane %v195, %v307
  %v309 = vmul.f32 %v303, %v308
  %v310 = vlaneseq
  %v311 = vshrl.u32 %v310, 7
  %v312 = vsub.s32 0, %v311
  %v313 = vrot.slane %v196, %v312
  %v314 = vadd.f32 %v309, %v313
  %315 = vset.pattern.permute.xlu0 1
  %316 = vperm.xlu0 %315, %v299
  %v317 = vpop.permute.xlu0 %316
  %v319 = vlaneseq
  %v320 = vshrl.u32 %v319, 7
  %v321 = vsub.s32 4, %v320
  %v322 = vrot.slane %v195, %v321
  %v323 = vmul.f32 %v317, %v322
  %v324 = vadd.f32 %v314, %v323
  %325 = vset.pattern.permute.xlu0 2
  %326 = vperm.xlu0 %325, %v299
  %v327 = vpop.permute.xlu0 %326
  %v329 = vlaneseq
  %v330 = vshrl.u32 %v329, 7
  %v331 = vsub.s32 5, %v330
  %v332 = vrot.slane %v195, %v331
  %v333 = vmul.f32 %v327, %v332
  %v334 = vadd.f32 %v324, %v333
  %335 = vset.pattern.permute.xlu0 3
  %336 = vperm.xlu0 %335, %v299
  %v337 = vpop.permute.xlu0 %336
  %v339 = vlaneseq
  %v340 = vshrl.u32 %v339, 7
  %v341 = vsub.s32 6, %v340
  %v342 = vrot.slane %v195, %v341
  %v343 = vmul.f32 %v337, %v342
  %v344 = vadd.f32 %v334, %v343
  %345 = vset.pattern.permute.xlu0 4
  %346 = vperm.xlu0 %345, %v299
  %v347 = vpop.permute.xlu0 %346
  %v349 = vlaneseq
  %v350 = vshrl.u32 %v349, 7
  %v351 = vsub.s32 7, %v350
  %v352 = vrot.slane %v195, %v351
  %v353 = vmul.f32 %v347, %v352
  %v354 = vadd.f32 %v344, %v353
  %v355 = vxor.u32 %v354, 2147483648
  %v356 = vmul.f32 %v355, 1.442695
  %v357 = vpow.pop %v356
  %v358 = vadd.f32 %v357, 1.0
  %v359 = vrcp.pop %v358
  %v360 = vmul.f32 1.0, %v359
  %v361 = vlaneseq
  %v362 = vand.u32 %v361, 127
  %vm363 = vcmp.lt.s32.totalorder %v362, 0
  %v364 = vsub.s32 0, %v362
  %v365 = vsel %vm363, %v364, %v362
  %v366 = vshrl.u32 %v365, 1
  %v367 = vand.u32 %v365, 1
  %v368 = vsub.s32 0, %v367
  %v369 = vsel %vm363, %v368, %v367
  %vm370 = vcmp.ne.s32.totalorder %v369, 0
  %vm371 = vcmp.lt.s32.totalorder %v369, 0
  %vm372 = vmand %vm371, %vm370
  %v373 = vadd.s32 %v369, 2
  %v374 = vsel %vm372, %v373, %v369
  %vm375 = vcmp.eq.s32.totalorder %v374, 0
  %v376 = vsub.f32 0.0, %v360
  %v377 = vsel %vm375, 1, 0
  %vm378 = vcmp.eq.s32.totalorder %v377, 1
  %v379 = vsel %vm378, %v376, %v360
  %v380 = vmul.f32 %v187, %v187
  %382 = vrot.lane.b32.xlu0 %v380, 4
  %v383 = vpop.permute.xlu0 %382
  %386 = vrot.lane.b32.xlu0 %v379, 8
  %v387 = vpop.permute.xlu0 %386
  %390 = vrot.lane.b32.xlu0 %v193, 16
  %v391 = vpop.permute.xlu0 %390
  %v393 = vsel %vm24, %v187, %v383
  %vm394 = vcmask 64512
  %v395 = vsel %vm394, %v393, %v387
  %vm396 = vcmask 130048
  %v397 = vsel %vm396, %v395, %v391
  %vm398 = vcmask 162816
  %399 = vst.msk [vmem:[%s4] sm:$0xff] %vm398, %v397
  // Predicated region
  $region18: #{iflow_forward.1} parent=0 // pred_check
    _
  $region19: #{iflow_forward.1} parent=0 // pred_check_branch
    %401 = sbr.rel (0) target = $region21
  $region20: #{iflow_forward.1} parent=0 // pred_region
    _
  $region21: #{iflow_forward.1} parent=0 // pred_fallthru
    _
  // Predicated region
  $region22: #{iflow_forward.1} parent=0 // pred_check
    _
  $region23: #{iflow_forward.1} parent=0 // pred_check_branch
    %403 = sbr.rel (0) target = $region25
  $region24: #{iflow_forward.1} parent=0 // pred_region
    _
  $region25: #{iflow_forward.1} parent=0 // pred_fallthru
    _

</llo_original>
